<compile_context>
chip_gen: v7x
topology: tpu7x:2x2x1
jax: 0.10.0
libtpu: 0.0.40
codegen_flags: <defaults>
</compile_context>

<pallas_src>
import functools

import jax
import jax.numpy as jnp
from jax import lax
from jax.experimental import pallas as pl
from jax.experimental.pallas import tpu as pltpu


def _margin_partial_kernel(x_ref, o_ref, *, total_rows: int, tile_rows: int,
                           num_tiles: int):
    """Per-tile column partial sums.

    x_ref: VMEM (TB, C)  input tile in native dtype
    o_ref: VMEM (1, C)   f32 column partial-sum for this tile (own block)
    """
    i = pl.program_id(0)
    # Cast AFTER the load so bf16 inputs stream half the HBM bytes.
    x = x_ref[...].astype(jnp.float32)  # (TB, C)

    def _partial(xv):
        # Sublane-direction reduce only; the single cross-lane reduce happens
        # once in the wrapper, not per grid step.
        return jnp.sum(xv, axis=0, keepdims=True)  # (1, C) f32

    if total_rows % tile_rows != 0:
        # Ragged: mask padded rows, but only on the last tile.
        last = num_tiles - 1

        @pl.when(i != last)
        def _():
            o_ref[...] = _partial(x)

        @pl.when(i == last)
        def _():
            valid_rows = total_rows - i * tile_rows
            row_ids = lax.broadcasted_iota(jnp.int32, (tile_rows, 1), 0)
            o_ref[...] = _partial(jnp.where(row_ids < valid_rows, x, 0.0))
    else:
        o_ref[...] = _partial(x)


def margin_loss(x: jax.Array, y: jax.Array, *, tile_rows=None) -> jax.Array:
    """x: [B, C] (f32/bf16), y: scalar (or shape-(1,)) int class index -> scalar f32."""
    B, C = x.shape
    itemsize = jnp.dtype(x.dtype).itemsize
    # Sublane packing multiple: 8 rows for 32-bit, 16 for 16-bit, 32 for 8-bit.
    mult = {4: 8, 2: 16, 1: 32}.get(itemsize, 8)

    # ---- batch-tile selection -----------------------------------------------
    if tile_rows is None:
        # Mem-bound reduction: ~16 MiB per input buffer -> ~32 MiB double
        # buffered; fits v7x's 64 MiB per-TC VMEM with headroom and trims
        # per-grid-step overhead on all generations.
        max_tile_bytes = 16 * 1024 * 1024
        tile_rows = max(mult, (max_tile_bytes // (C * itemsize)) // mult * mult)
    tile_rows = int(tile_rows)
    if tile_rows >= B:
        tile_rows = B                              # one full block (exempt from the 8-row rule)
    else:
        tile_rows = max(mult, (tile_rows // mult) * mult)
        if tile_rows >= B:
            tile_rows = B
    num_tiles = pl.cdiv(B, tile_rows)

    kernel = functools.partial(
        _margin_partial_kernel,
        total_rows=B, tile_rows=tile_rows, num_tiles=num_tiles)

    # ---- compiler params ------------------------------------------------------
    tile_bytes = tile_rows * C * itemsize
    out_block_bytes = C * 4
    # Always set explicitly (v5e scoped default is only 16 MiB). With the
    # default 16 MiB tile this stays ~36 MiB, under every generation's VMEM.
    vmem_limit = 2 * tile_bytes + 2 * out_block_bytes + (4 << 20)

    partials = pl.pallas_call(
        kernel,
        out_shape=jax.ShapeDtypeStruct((num_tiles, 1, C), jnp.float32),
        grid=(num_tiles,),
        in_specs=[pl.BlockSpec((tile_rows, C), lambda i: (i, 0))],
        # Squeezed leading dim: kernel sees a (1, C) block; last two block dims
        # equal the full trailing dims, so no (8,128) masking on the store.
        out_specs=pl.BlockSpec((None, 1, C), lambda i: (i, 0, 0)),
        compiler_params=pltpu.CompilerParams(
            dimension_semantics=("parallel",),     # independent tiles -> megacore / dual-TC
            vmem_limit_bytes=vmem_limit),
        cost_estimate=pl.CostEstimate(
            flops=B * C, transcendentals=0,
            bytes_accessed=B * C * itemsize + num_tiles * C * 4),
    )(x)

    # ---- tiny finalization in the wrapper ------------------------------------
    y_idx = jnp.reshape(y, ()).astype(jnp.int32)
    mean_x = jnp.sum(partials) * jnp.float32(1.0 / float(B * C))
    tgt = x[0, y_idx].astype(jnp.float32)          # plain XLA gather
    return mean_x - tgt


if __name__ == "__main__":
    key = jax.random.PRNGKey(0)
    kx1, ky1, kx2, ky2, kx3, ky3 = jax.random.split(key, 6)

    # 1) tiny classification-logits shape (single-block path, B < 8)
    B1, C1 = 4, 16
    x1 = jax.random.normal(kx1, (B1, C1), dtype=jnp.float32)
    y1 = jax.random.randint(ky1, (), 0, C1, dtype=jnp.int32)
    out1 = jax.block_until_ready(margin_loss(x1, y1))
    ref1 = jnp.mean(x1 - x1[0, int(y1)])
    assert jnp.allclose(out1, ref1, atol=1e-6, rtol=1e-6), (out1, ref1)

    # 2) multi-tile f32 with forced 8-row tiles: exercises the parallel
    #    partial-sum grid and the ragged last tile (52 = 6*8 + 4 rows).
    B2, C2 = 52, 128
    x2 = jax.random.normal(kx2, (B2, C2), dtype=jnp.float32)
    y2 = jax.random.randint(ky2, (), 0, C2, dtype=jnp.int32)
    out2 = jax.block_until_ready(margin_loss(x2, y2, tile_rows=8))
    ref2 = jnp.mean(x2 - x2[0, int(y2)])
    assert jnp.allclose(out2, ref2, atol=1e-5, rtol=1e-5), (out2, ref2)

    # 3) bf16 input streamed in native dtype (no wrapper upcast), 16-row tiles.
    B3, C3 = 64, 256
    x3 = jax.random.normal(kx3, (B3, C3), dtype=jnp.float32).astype(jnp.bfloat16)
    y3 = jax.random.randint(ky3, (), 0, C3, dtype=jnp.int32)
    out3 = jax.block_until_ready(margin_loss(x3, y3, tile_rows=16))
    ref3 = jnp.mean(x3.astype(jnp.float32)) - x3[0, int(y3)].astype(jnp.float32)
    assert jnp.allclose(out3, ref3, atol=1e-3, rtol=1e-3), (out3, ref3)

    print("KERNEL_OK")
</pallas_src>

<mosaic_0001>
module attributes {stable_mosaic.version = 11 : i64} {
  func.func @_margin_partial_kernel(%arg0: i32, %arg1: memref<4x16xf32, #tpu.memory_space<vmem>>, %arg2: memref<1x1x16xf32, #tpu.memory_space<vmem>>) attributes {dimension_semantics = [#tpu.dimension_semantics<parallel>], iteration_bounds = array<i64: 1>, scalar_prefetch = 0 : i64, scratch_operands = 0 : i64, tpu.core_type = #tpu.core_type<tc>, window_params = [{transform_indices = @transform_0, window_bounds = array<i64: 4, 16>}, {transform_indices = @transform_1, window_bounds = array<i64: 1, 1, 16>}]} {
    %c0 = arith.constant 0 : index
    %c0_0 = arith.constant 0 : index
    %0 = vector.load %arg1[%c0, %c0_0] : memref<4x16xf32, #tpu.memory_space<vmem>>, vector<4x16xf32>
    %cst = arith.constant dense<0.000000e+00> : vector<16xf32>
    %1 = vector.multi_reduction <add>, %0, %cst [0] : vector<4x16xf32> to vector<16xf32>
    %2 = vector.shape_cast %1 : vector<16xf32> to vector<1x16xf32>
    %c0_1 = arith.constant 0 : index
    %c0_2 = arith.constant 0 : index
    %c0_3 = arith.constant 0 : index
    %3 = vector.load %arg2[%c0_1, %c0_2, %c0_3] : memref<1x1x16xf32, #tpu.memory_space<vmem>>, vector<1x1x16xf32>
    %4 = vector.shape_cast %3 : vector<1x1x16xf32> to vector<1x16xf32>
    %5 = vector.shape_cast %2 : vector<1x16xf32> to vector<1x1x16xf32>
    tpu.vector_store %arg2[%c0_1, %c0_2, %c0_3], %5 {strides = array<i32>} : memref<1x1x16xf32, #tpu.memory_space<vmem>>, vector<1x1x16xf32>,
    return
  }
  func.func @transform_0(%arg0: i32) -> (i32, i32) {
    %c0_i32 = arith.constant 0 : i32
    %c0_i32_0 = arith.constant 0 : i32
    return %arg0, %c0_i32 : i32, i32
  }
  func.func @transform_1(%arg0: i32) -> (i32, i32, i32) {
    %c0_i32 = arith.constant 0 : i32
    %c0_i32_0 = arith.constant 0 : i32
    %c0_i32_1 = arith.constant 0 : i32
    return %arg0, %c0_i32, %c0_i32_0 : i32, i32, i32
  }
}

</mosaic_0001>

<llo_original>
// kernel: tpu_custom_call.1
$region0: #{tpu_custom_call.1}
  #allocation0 [shape = 'u32[]', space=smem, size = 0x4, offset = 0x4, fixed_abs, tag = 'smem constant byte address 0x4 - core index']
  #allocation1 [shape = 'u32[144,128]{1,0:T(1,128)}', space=vmem, size = 0x12000, scoped, tag = 'internal scratch']
  %s0 = inlined_call_operand.hbm [shape: f32[4,16], index: 0, kind: input, shape index: {}]
  %s1 = inlined_call_operand.hbm [shape: f32[1,1,16], index: 1, kind: output, shape index: {}]
  %s2 = sld [smem:[#allocation0]]
  $region18: #{tpu_custom_call.1} parent=0
    _
  %s4 = ssub.s32 1, %s2
  %s5 = scalar_select 0, %s4, %s2
  $region1: #{tpu_custom_call.1} parent=0
    #allocation2 [shape = 'u8[2048]{0}', space=vmem, size = 0x800, scoped, tag = 'input window, operand 0, single buffered']
    #allocation3 [shape = 's32[1]{0}', space=sflag, size = 0x4, scoped, tag = 'scoped memory for tpu_custom_call.1']
    #allocation4 [shape = 's32[1]{0}', space=sflag, size = 0x4, scoped, tag = 'scoped memory for tpu_custom_call.1']
    #allocation5 [shape = 'u8[512]{0}', space=vmem, size = 0x400, scoped, tag = 'output window, operand 0, single buffered']
    %6 = vsyncpa [#allocation3], 0
    %7 = vsyncpa [#allocation4], 0
    // Predicated region
    $region2: #{tpu_custom_call.1} parent=1 // pred_check
      _
    $region3: #{tpu_custom_call.1} parent=1 // pred_check_branch
      %9 = sbr.rel (0) target = $region5
    $region4: #{tpu_custom_call.1} parent=1 // pred_region
      %s11 = ssub.s32 64, 64
      %12 = vsyncadd [#allocation3], %s11
      %s14 = sshll.u32 [#allocation2], 4
      %s15 = int_to_ptr.vmem [resolvable:$true] %s14
      %17 = dma.hbm_to_vmem [thread:$0]  %s0, 64, %s15, [#allocation3]
    $region5: #{tpu_custom_call.1} parent=1 // pred_fallthru
      _
    // Predicated region
    $region6: #{tpu_custom_call.1} parent=1 // pred_check
      _
    $region7: #{tpu_custom_call.1} parent=1 // pred_check_branch
      %19 = sbr.rel (0) target = $region9
    $region8: #{tpu_custom_call.1} parent=1 // pred_region
      %20 = dma.done [#allocation3], 64
    $region9: #{tpu_custom_call.1} parent=1 // pred_fallthru
      _
    %v21 = vld [vmem:[#allocation2] sm:$0xf]
    %vm22 = vcmask 125952
    %v23 = vsel %vm22, %v21, 0.0
    %v24 = vrot.slane %v23, 4
    %v25 = vadd.f32 %v23, %v24
    %v26 = vrot.slane %v25, 2
    %v27 = vadd.f32 %v25, %v26
    %v28 = vrot.slane %v27, 1
    %v29 = vadd.f32 %v27, %v28
    %vm30 = vcmask 122880
    %31 = vst.msk [vmem:[#allocation5] sm:$0x1] %vm30, %v29
    // Predicated region
    $region10: #{tpu_custom_call.1} parent=1 // pred_check
      _
    $region11: #{tpu_custom_call.1} parent=1 // pred_check_branch
      %33 = sbr.rel (0) target = $region13
    $region12: #{tpu_custom_call.1} parent=1 // pred_region
      %s35 = ssub.s32 16, 16
      %36 = vsyncadd [#allocation4], %s35
      %s38 = sshll.u32 [#allocation5], 4
      %s39 = int_to_ptr.vmem [resolvable:$true] %s38
      %41 = dma.vmem_to_hbm [thread:$0]  %s39, 16, %s1, [#allocation4]
    $region13: #{tpu_custom_call.1} parent=1 // pred_fallthru
      _
    // Predicated region
    $region14: #{tpu_custom_call.1} parent=1 // pred_check
      _
    $region15: #{tpu_custom_call.1} parent=1 // pred_check_branch
      %43 = sbr.rel (0) target = $region17
    $region16: #{tpu_custom_call.1} parent=1 // pred_region
      %44 = dma.done [#allocation4], 16
    $region17: #{tpu_custom_call.1} parent=1 // pred_fallthru
      _
    %45 = vsyncpa [#allocation3], 1
    %46 = vsyncpa [#allocation4], 1

</llo_original>
